<compile_context>
chip_gen: v7x
topology: tpu7x:2x2x1
jax: 0.10.0
libtpu: 0.0.40
codegen_flags: <defaults>
</compile_context>

<pallas_src>
import functools

import jax
import jax.numpy as jnp
from jax.experimental import pallas as pl
from jax.experimental.pallas import tpu as pltpu


def _round_up(n: int, m: int) -> int:
    return (n + m - 1) // m * m


def _vmem_capacity_bytes() -> int:
    """Trace-time VMEM capacity query; conservative fallback if unavailable."""
    try:
        return int(pltpu.get_tpu_info().vmem_capacity_bytes)
    except Exception:
        return 64 << 20  # v7x per-TC physical VMEM (most restrictive)


# ---------------------------------------------------------------------------
# Kernels
# ---------------------------------------------------------------------------

def mlp_kernel_resident(x_ref, w1_ref, b1_ref, w2_ref, b2_ref, o_ref):
    """Whole hidden dim resident: one (tb, in_p) x tile in, one (tb, out_p) tile out."""
    h = jnp.dot(x_ref[...], w1_ref[...], preferred_element_type=jnp.float32)
    h = jnp.maximum(h + b1_ref[...], 0.0)
    y = jnp.dot(h.astype(w2_ref.dtype), w2_ref[...],
                preferred_element_type=jnp.float32)
    o_ref[...] = (y + b2_ref[...]).astype(o_ref.dtype)


def mlp_kernel_ktiled(x_ref, w1_ref, b1_ref, w2_ref, b2_ref, o_ref, acc_ref):
    """Hidden dim streamed in tk-wide blocks; f32 accumulator over the k grid axis."""
    k = pl.program_id(1)

    @pl.when(k == 0)
    def _():
        acc_ref[...] = jnp.zeros_like(acc_ref)

    h = jnp.dot(x_ref[...], w1_ref[...], preferred_element_type=jnp.float32)
    h = jnp.maximum(h + b1_ref[...], 0.0)
    acc_ref[...] += jnp.dot(h.astype(w2_ref.dtype), w2_ref[...],
                            preferred_element_type=jnp.float32)

    @pl.when(k == pl.num_programs(1) - 1)
    def _():
        o_ref[...] = (acc_ref[...] + b2_ref[...]).astype(o_ref.dtype)


# ---------------------------------------------------------------------------
# Parameter preparation (done ONCE, hoisted out of the per-call forward)
# ---------------------------------------------------------------------------

def prepare_params(w1, b1, w2, b2, compute_dtype=jnp.bfloat16):
    """Pad feature dims to multiples of 128 and cast weights to the compute dtype.

    w1: (in, 2*in), b1: (1, 2*in), w2: (2*in, out), b2: (1, out)   [pre-transposed]
    Returns padded (w1p, b1p, w2p, b2p); biases stay f32 (bias-add/ReLU are f32).
    """
    in_f, hid = w1.shape
    out_f = w2.shape[1]
    in_p, hid_p, out_p = (_round_up(in_f, 128), _round_up(hid, 128),
                          _round_up(out_f, 128))
    w1p = jnp.pad(w1.astype(compute_dtype), ((0, in_p - in_f), (0, hid_p - hid)))
    b1p = jnp.pad(b1.astype(jnp.float32), ((0, 0), (0, hid_p - hid)))
    w2p = jnp.pad(w2.astype(compute_dtype), ((0, hid_p - hid), (0, out_p - out_f)))
    b2p = jnp.pad(b2.astype(jnp.float32), ((0, 0), (0, out_p - out_f)))
    return w1p, b1p, w2p, b2p


# ---------------------------------------------------------------------------
# Forward
# ---------------------------------------------------------------------------

@functools.partial(
    jax.jit,
    static_argnames=("out_features", "tile_b", "out_dtype", "core_parallel",
                     "force_path", "tk_hid"))
def toy_model_forward(x, w1p, b1p, w2p, b2p, *, out_features,
                      tile_b: int = 512, out_dtype=jnp.float32,
                      core_parallel: bool = False, force_path=None, tk_hid=None):
    """x: (B, in_features) f32; padded params from prepare_params()."""
    B, in_f = x.shape
    in_p, hid_p = w1p.shape
    out_p = w2p.shape[1]

    cdt = w1p.dtype                              # compute dtype for MXU operands
    xbytes = jnp.dtype(cdt).itemsize
    wbytes = jnp.dtype(cdt).itemsize
    obytes = jnp.dtype(out_dtype).itemsize

    # Batch tile: >=16 sublanes (bf16 packs 16 rows / vreg), <= tile_b.
    tb = min(tile_b, _round_up(B, 16))
    if core_parallel and B > 16:
        tb = min(tb, _round_up((B + 1) // 2, 16))   # >=2 grid steps for 2 TCs (v7x)
    b_p = _round_up(B, tb)
    grid_b = b_p // tb

    # Stream x in the compute dtype: cast folded into the pad (halves x HBM traffic).
    xp = jnp.pad(x, ((0, b_p - B), (0, in_p - in_f))).astype(cdt)

    capacity = _vmem_capacity_bytes()
    resident_bytes = ((in_p * hid_p + hid_p * out_p) * wbytes   # Buffered(1) weights
                      + (hid_p + out_p) * 4                     # f32 biases
                      + 2 * tb * in_p * xbytes                  # x double buffer
                      + 2 * tb * out_p * obytes                 # out double buffer
                      + tb * hid_p * 4)                         # f32 h intermediate
    use_resident = (force_path == "resident"
                    or (force_path is None
                        and resident_bytes <= int(0.6 * capacity)))

    batch_sem = pltpu.CORE_PARALLEL if core_parallel else pltpu.PARALLEL

    flops = 2 * b_p * (in_p * hid_p + hid_p * out_p)
    bytes_accessed = (b_p * in_p * xbytes
                      + (in_p * hid_p + hid_p * out_p) * wbytes
                      + (hid_p + out_p) * 4
                      + b_p * out_p * obytes)
    cost = pl.CostEstimate(flops=flops, transcendentals=0,
                           bytes_accessed=bytes_accessed)

    if use_resident:
        vmem_limit = min(int(0.9 * capacity),
                         max(32 << 20, int(1.25 * resident_bytes) + (2 << 20)))
        out_padded = pl.pallas_call(
            mlp_kernel_resident,
            out_shape=jax.ShapeDtypeStruct((b_p, out_p), out_dtype),
            grid=(grid_b,),
            in_specs=[
                # x: streamed per batch tile (double-buffered by default).
                pl.BlockSpec((tb, in_p), lambda i: (i, 0)),
                # Weights / biases: constant index_map -> DMA'd once, single buffer.
                pl.BlockSpec((in_p, hid_p), lambda i: (0, 0),
                             pipeline_mode=pl.Buffered(1)),
                pl.BlockSpec((1, hid_p), lambda i: (0, 0),
                             pipeline_mode=pl.Buffered(1)),
                pl.BlockSpec((hid_p, out_p), lambda i: (0, 0),
                             pipeline_mode=pl.Buffered(1)),
                pl.BlockSpec((1, out_p), lambda i: (0, 0),
                             pipeline_mode=pl.Buffered(1)),
            ],
            # Lane-dense output tile (out_p multiple of 128 -> unmasked stores).
            out_specs=pl.BlockSpec((tb, out_p), lambda i: (i, 0)),
            compiler_params=pltpu.CompilerParams(
                dimension_semantics=(batch_sem,),
                vmem_limit_bytes=vmem_limit),
            cost_estimate=cost,
        )(xp, w1p, b1p, w2p, b2p)
    else:
        # Fallback: stream the hidden dim in tk-wide blocks (reduction axis last).
        if tk_hid is not None:
            tk = tk_hid
        else:
            tk = 512 if hid_p % 512 == 0 else (256 if hid_p % 256 == 0 else 128)
        grid_k = hid_p // tk
        ktiled_bytes = (2 * (in_p * tk + tk * out_p) * wbytes   # streamed weight bufs
                        + 2 * tk * 4 + out_p * 4                # biases
                        + 2 * tb * in_p * xbytes                # x double buffer
                        + 2 * tb * out_p * obytes               # out double buffer
                        + tb * out_p * 4                        # f32 accumulator
                        + tb * tk * 4)                          # f32 h block
        vmem_limit = min(int(0.9 * capacity),
                         max(32 << 20, int(1.25 * ktiled_bytes) + (2 << 20)))
        out_padded = pl.pallas_call(
            mlp_kernel_ktiled,
            out_shape=jax.ShapeDtypeStruct((b_p, out_p), out_dtype),
            grid=(grid_b, grid_k),
            in_specs=[
                pl.BlockSpec((tb, in_p), lambda i, k: (i, 0)),
                pl.BlockSpec((in_p, tk), lambda i, k: (0, k)),
                pl.BlockSpec((1, tk), lambda i, k: (0, k)),
                pl.BlockSpec((tk, out_p), lambda i, k: (k, 0)),
                pl.BlockSpec((1, out_p), lambda i, k: (0, 0),
                             pipeline_mode=pl.Buffered(1)),
            ],
            out_specs=pl.BlockSpec((tb, out_p), lambda i, k: (i, 0)),
            scratch_shapes=[pltpu.VMEM((tb, out_p), jnp.float32)],
            compiler_params=pltpu.CompilerParams(
                dimension_semantics=(batch_sem, pltpu.ARBITRARY),
                vmem_limit_bytes=vmem_limit),
            cost_estimate=cost,
        )(xp, w1p, b1p, w2p, b2p)

    return out_padded[:B, :out_features]


# ---------------------------------------------------------------------------
# Init mimicking nn.Linear (weights stored pre-transposed as (in, out))
# ---------------------------------------------------------------------------

def init_params(key, in_features, out_features, dtype=jnp.float32):
    k1, k2, k3, k4 = jax.random.split(key, 4)
    hidden = 2 * in_features
    bound1 = 1.0 / jnp.sqrt(in_features)
    bound2 = 1.0 / jnp.sqrt(hidden)
    w1 = jax.random.uniform(k1, (in_features, hidden), dtype, -bound1, bound1)
    b1 = jax.random.uniform(k2, (1, hidden), dtype, -bound1, bound1)
    w2 = jax.random.uniform(k3, (hidden, out_features), dtype, -bound2, bound2)
    b2 = jax.random.uniform(k4, (1, out_features), dtype, -bound2, bound2)
    return w1, b1, w2, b2


if __name__ == "__main__":
    key = jax.random.PRNGKey(0)

    # --- Test 1: small shapes, fully-resident bf16 path ----------------------
    in_features, out_features, batch = 32, 16, 4
    kx, kp, kx2, kp2 = jax.random.split(key, 4)
    x = jax.random.normal(kx, (batch, in_features), jnp.float32)
    w1, b1, w2, b2 = init_params(kp, in_features, out_features)
    ref = jnp.maximum(x @ w1 + b1, 0.0) @ w2 + b2

    params_bf16 = prepare_params(w1, b1, w2, b2, compute_dtype=jnp.bfloat16)
    out = toy_model_forward(x, *params_bf16, out_features=out_features)
    jax.block_until_ready(out)
    assert out.shape == (batch, out_features)
    assert jnp.allclose(out, ref, atol=2e-2, rtol=2e-2), (
        float(jnp.max(jnp.abs(out - ref))))

    # Exact-f32 compute path at tight tolerance.
    params_f32 = prepare_params(w1, b1, w2, b2, compute_dtype=jnp.float32)
    out_f32 = toy_model_forward(x, *params_f32, out_features=out_features)
    jax.block_until_ready(out_f32)
    assert jnp.allclose(out_f32, ref, atol=1e-5, rtol=1e-5)

    # --- Test 2: hidden-dim-tiled fallback path (forced, 2 k-steps) ----------
    in_features2, out_features2, batch2 = 128, 16, 8
    x2 = jax.random.normal(kx2, (batch2, in_features2), jnp.float32)
    w1b, b1b, w2b, b2b = init_params(kp2, in_features2, out_features2)
    ref2 = jnp.maximum(x2 @ w1b + b1b, 0.0) @ w2b + b2b
    params2 = prepare_params(w1b, b1b, w2b, b2b, compute_dtype=jnp.bfloat16)
    out2 = toy_model_forward(x2, *params2, out_features=out_features2,
                             force_path="ktiled", tk_hid=128)
    jax.block_until_ready(out2)
    assert out2.shape == (batch2, out_features2)
    assert jnp.allclose(out2, ref2, atol=2e-2, rtol=2e-2), (
        float(jnp.max(jnp.abs(out2 - ref2))))

    print("KERNEL_OK")
</pallas_src>

<mosaic_0001>
module attributes {stable_mosaic.version = 11 : i64} {
  func.func @mlp_kernel_resident(%arg0: i32, %arg1: memref<16x128xbf16, #tpu.memory_space<vmem>>, %arg2: memref<128x128xbf16, #tpu.memory_space<vmem>>, %arg3: memref<1x128xf32, #tpu.memory_space<vmem>>, %arg4: memref<128x128xbf16, #tpu.memory_space<vmem>>, %arg5: memref<1x128xf32, #tpu.memory_space<vmem>>, %arg6: memref<16x128xf32, #tpu.memory_space<vmem>>) attributes {dimension_semantics = [#tpu.dimension_semantics<parallel>], iteration_bounds = array<i64: 1>, scalar_prefetch = 0 : i64, scratch_operands = 0 : i64, tpu.core_type = #tpu.core_type<tc>, window_params = [{transform_indices = @transform_0, window_bounds = array<i64: 16, 128>}, {pipeline_mode = #tpu.pipeline_mode<synchronous>, transform_indices = @transform_1, window_bounds = array<i64: 128, 128>}, {pipeline_mode = #tpu.pipeline_mode<synchronous>, transform_indices = @transform_2, window_bounds = array<i64: 1, 128>}, {pipeline_mode = #tpu.pipeline_mode<synchronous>, transform_indices = @transform_3, window_bounds = array<i64: 128, 128>}, {pipeline_mode = #tpu.pipeline_mode<synchronous>, transform_indices = @transform_4, window_bounds = array<i64: 1, 128>}, {transform_indices = @transform_5, window_bounds = array<i64: 16, 128>}]} {
    %c0 = arith.constant 0 : index
    %c0_0 = arith.constant 0 : index
    %0 = vector.load %arg1[%c0, %c0_0] : memref<16x128xbf16, #tpu.memory_space<vmem>>, vector<16x128xbf16>
    %c0_1 = arith.constant 0 : index
    %c0_2 = arith.constant 0 : index
    %1 = vector.load %arg2[%c0_1, %c0_2] : memref<128x128xbf16, #tpu.memory_space<vmem>>, vector<128x128xbf16>
    %cst = arith.constant dense<0.000000e+00> : vector<16x128xf32>
    %2 = tpu.matmul %0, %1, %cst {dimension_numbers = #tpu.dot_dimension_numbers<[1], [0], [0], [1], [0, 0, 1, 1], [], []>} : vector<16x128xbf16>, vector<128x128xbf16>, vector<16x128xf32> -> vector<16x128xf32>
    %c0_3 = arith.constant 0 : index
    %c0_4 = arith.constant 0 : index
    %3 = vector.load %arg3[%c0_3, %c0_4] : memref<1x128xf32, #tpu.memory_space<vmem>>, vector<1x128xf32>
    %4 = vector.broadcast %3 : vector<1x128xf32> to vector<16x128xf32>
    %5 = arith.addf %2, %4 : vector<16x128xf32>
    %cst_5 = arith.constant 0.000000e+00 : f32
    %6 = vector.broadcast %cst_5 : f32 to vector<16x128xf32>
    %7 = arith.maximumf %5, %6 : vector<16x128xf32>
    %8 = arith.truncf %7 : vector<16x128xf32> to vector<16x128xbf16>
    %c0_6 = arith.constant 0 : index
    %c0_7 = arith.constant 0 : index
    %9 = vector.load %arg4[%c0_6, %c0_7] : memref<128x128xbf16, #tpu.memory_space<vmem>>, vector<128x128xbf16>
    %cst_8 = arith.constant dense<0.000000e+00> : vector<16x128xf32>
    %10 = tpu.matmul %8, %9, %cst_8 {dimension_numbers = #tpu.dot_dimension_numbers<[1], [0], [0], [1], [0, 0, 1, 1], [], []>} : vector<16x128xbf16>, vector<128x128xbf16>, vector<16x128xf32> -> vector<16x128xf32>
    %c0_9 = arith.constant 0 : index
    %c0_10 = arith.constant 0 : index
    %11 = vector.load %arg5[%c0_9, %c0_10] : memref<1x128xf32, #tpu.memory_space<vmem>>, vector<1x128xf32>
    %12 = vector.broadcast %11 : vector<1x128xf32> to vector<16x128xf32>
    %13 = arith.addf %10, %12 : vector<16x128xf32>
    %c0_11 = arith.constant 0 : index
    %c0_12 = arith.constant 0 : index
    %14 = vector.load %arg6[%c0_11, %c0_12] : memref<16x128xf32, #tpu.memory_space<vmem>>, vector<16x128xf32>
    tpu.vector_store %arg6[%c0_11, %c0_12], %13 {strides = array<i32>} : memref<16x128xf32, #tpu.memory_space<vmem>>, vector<16x128xf32>,
    return
  }
  func.func @transform_0(%arg0: i32) -> (i32, i32) {
    %c0_i32 = arith.constant 0 : i32
    %c0_i32_0 = arith.constant 0 : i32
    return %arg0, %c0_i32 : i32, i32
  }
  func.func @transform_1(%arg0: i32) -> (i32, i32) {
    %c0_i32 = arith.constant 0 : i32
    %c0_i32_0 = arith.constant 0 : i32
    %c0_i32_1 = arith.constant 0 : i32
    return %c0_i32, %c0_i32_0 : i32, i32
  }
  func.func @transform_2(%arg0: i32) -> (i32, i32) {
    %c0_i32 = arith.constant 0 : i32
    %c0_i32_0 = arith.constant 0 : i32
    %c0_i32_1 = arith.constant 0 : i32
    return %c0_i32, %c0_i32_0 : i32, i32
  }
  func.func @transform_3(%arg0: i32) -> (i32, i32) {
    %c0_i32 = arith.constant 0 : i32
    %c0_i32_0 = arith.constant 0 : i32
    %c0_i32_1 = arith.constant 0 : i32
    return %c0_i32, %c0_i32_0 : i32, i32
  }
  func.func @transform_4(%arg0: i32) -> (i32, i32) {
    %c0_i32 = arith.constant 0 : i32
    %c0_i32_0 = arith.constant 0 : i32
    %c0_i32_1 = arith.constant 0 : i32
    return %c0_i32, %c0_i32_0 : i32, i32
  }
  func.func @transform_5(%arg0: i32) -> (i32, i32) {
    %c0_i32 = arith.constant 0 : i32
    %c0_i32_0 = arith.constant 0 : i32
    return %arg0, %c0_i32 : i32, i32
  }
}

</mosaic_0001>

<llo_original>
// kernel: toy_model_forward.1
$region0: #{toy_model_forward.1}
  #allocation0 [shape = 'u32[]', space=smem, size = 0x4, offset = 0x4, fixed_abs, tag = 'smem constant byte address 0x4 - core index']
  #allocation1 [shape = 'u32[144,128]{1,0:T(1,128)}', space=vmem, size = 0x12000, scoped, tag = 'internal scratch']
  %s0 = inlined_call_operand.vmem [shape: bf16[16,128], index: 0, kind: input, shape index: {}]
  %s1 = inlined_call_operand.hbm [shape: bf16[128,128], index: 1, kind: input, shape index: {}]
  %s2 = inlined_call_operand.vmem [shape: f32[1,128], index: 2, kind: input, shape index: {}]
  %s3 = inlined_call_operand.hbm [shape: bf16[128,128], index: 3, kind: input, shape index: {}]
  %s4 = inlined_call_operand.vmem [shape: f32[1,128], index: 4, kind: input, shape index: {}]
  %s5 = inlined_call_operand.vmem [shape: f32[16,128], index: 5, kind: output, shape index: {}]
  %s6 = sld [smem:[#allocation0]]
  $region38: #{toy_model_forward.1} parent=0
    _
  %s8 = ssub.s32 1, %s6
  %s9 = scalar_select 0, %s8, %s6
  $region1: #{toy_model_forward.1} parent=0
    #allocation2 [shape = 'u8[32768]{0}', space=vmem, size = 0x8000, scoped, tag = 'input window, operand 1, single buffered']
    #allocation3 [shape = 's32[1]{0}', space=sflag, size = 0x4, scoped, tag = 'scoped memory for toy_model_forward.1']
    #allocation4 [shape = 'u8[32768]{0}', space=vmem, size = 0x8000, scoped, tag = 'input window, operand 3, single buffered']
    #allocation5 [shape = 's32[1]{0}', space=sflag, size = 0x4, scoped, tag = 'scoped memory for toy_model_forward.1']
    %10 = vsyncpa [#allocation3], 0
    %11 = vsyncpa [#allocation5], 0
    // Predicated region
    $region2: #{toy_model_forward.1} parent=1 // pred_check
      _
    $region3: #{toy_model_forward.1} parent=1 // pred_check_branch
      %13 = sbr.rel (0) target = $region5
    $region4: #{toy_model_forward.1} parent=1 // pred_region
      _
    $region5: #{toy_model_forward.1} parent=1 // pred_fallthru
      _
    // Predicated region
    $region6: #{toy_model_forward.1} parent=1 // pred_check
      _
    $region7: #{toy_model_forward.1} parent=1 // pred_check_branch
      %15 = sbr.rel (0) target = $region9
    $region8: #{toy_model_forward.1} parent=1 // pred_region
      %s17 = ssub.s32 1024, 1024
      %18 = vsyncadd [#allocation3], %s17
      %s19 = sshll.u32 [#allocation2], 4
      %s20 = int_to_ptr.vmem [resolvable:$true] %s19
      %25 = dma.hbm_to_vmem [thread:$0]  %s1, 1024, %s20, [#allocation3], 64, 64, 4
    $region9: #{toy_model_forward.1} parent=1 // pred_fallthru
      _
    // Predicated region
    $region10: #{toy_model_forward.1} parent=1 // pred_check
      _
    $region11: #{toy_model_forward.1} parent=1 // pred_check_branch
      %27 = sbr.rel (0) target = $region13
    $region12: #{toy_model_forward.1} parent=1 // pred_region
      _
    $region13: #{toy_model_forward.1} parent=1 // pred_fallthru
      _
    // Predicated region
    $region14: #{toy_model_forward.1} parent=1 // pred_check
      _
    $region15: #{toy_model_forward.1} parent=1 // pred_check_branch
      %29 = sbr.rel (0) target = $region17
    $region16: #{toy_model_forward.1} parent=1 // pred_region
      %s31 = ssub.s32 1024, 1024
      %32 = vsyncadd [#allocation5], %s31
      %s33 = sshll.u32 [#allocation4], 4
      %s34 = int_to_ptr.vmem [resolvable:$true] %s33
      %39 = dma.hbm_to_vmem [thread:$0]  %s3, 1024, %s34, [#allocation5], 64, 64, 4
    $region17: #{toy_model_forward.1} parent=1 // pred_fallthru
      _
    // Predicated region
    $region18: #{toy_model_forward.1} parent=1 // pred_check
      _
    $region19: #{toy_model_forward.1} parent=1 // pred_check_branch
      %41 = sbr.rel (0) target = $region21
    $region20: #{toy_model_forward.1} parent=1 // pred_region
      _
    $region21: #{toy_model_forward.1} parent=1 // pred_fallthru
      _
    // Predicated region
    $region22: #{toy_model_forward.1} parent=1 // pred_check
      _
    $region23: #{toy_model_forward.1} parent=1 // pred_check_branch
      %43 = sbr.rel (0) target = $region25
    $region24: #{toy_model_forward.1} parent=1 // pred_region
      %44 = dma.done [#allocation3], 1024
    $region25: #{toy_model_forward.1} parent=1 // pred_fallthru
      _
    // Predicated region
    $region26: #{toy_model_forward.1} parent=1 // pred_check
      _
    $region27: #{toy_model_forward.1} parent=1 // pred_check_branch
      %46 = sbr.rel (0) target = $region29
    $region28: #{toy_model_forward.1} parent=1 // pred_region
      %47 = dma.done [#allocation5], 1024
    $region29: #{toy_model_forward.1} parent=1 // pred_fallthru
      _
    %v49 = vld [vmem:[%s0] sm:$0xf]
    %v50 = vld [vmem:[%s0 + $0x4] sm:$0xf]
    %v51 = vld [vmem:[#allocation2] sm:$0xf]
    %v52 = vld [vmem:[#allocation2 + $0x4] sm:$0xf]
    %v53 = vld [vmem:[#allocation2 + $0x8] sm:$0xf]
    %v54 = vld [vmem:[#allocation2 + $0xc] sm:$0xf]
    %v55 = vld [vmem:[#allocation2 + $0x10] sm:$0xf]
    %v56 = vld [vmem:[#allocation2 + $0x14] sm:$0xf]
    %v57 = vld [vmem:[#allocation2 + $0x18] sm:$0xf]
    %v58 = vld [vmem:[#allocation2 + $0x1c] sm:$0xf]
    %v59 = vld [vmem:[#allocation2 + $0x20] sm:$0xf]
    %v60 = vld [vmem:[#allocation2 + $0x24] sm:$0xf]
    %v61 = vld [vmem:[#allocation2 + $0x28] sm:$0xf]
    %v62 = vld [vmem:[#allocation2 + $0x2c] sm:$0xf]
    %v63 = vld [vmem:[#allocation2 + $0x30] sm:$0xf]
    %v64 = vld [vmem:[#allocation2 + $0x34] sm:$0xf]
    %v65 = vld [vmem:[#allocation2 + $0x38] sm:$0xf]
    %v66 = vld [vmem:[#allocation2 + $0x3c] sm:$0xf]
    %v67 = vld [vmem:[%s2] sm:$0x1]
    %v69 = vlaneseq
    %v70 = vshrl.u32 %v69, 7
    %v71 = vsub.s32 0, %v70
    %v72 = vrot.slane %v67, %v71
    %v76 = vunpack.c.l.b16 %v49
    %v77 = vunpack.c.l.b16 %v50
    %v78 = vpack.c.b16 %v77, %v76
    %v96 = vunpack.c.l.b16 %v51
    %v97 = vunpack.c.l.b16 %v52
    %v98 = vunpack.c.l.b16 %v53
    %v99 = vunpack.c.l.b16 %v54
    %v100 = vunpack.c.l.b16 %v55
    %v101 = vunpack.c.l.b16 %v56
    %v102 = vunpack.c.l.b16 %v57
    %v103 = vunpack.c.l.b16 %v58
    %v104 = vunpack.c.l.b16 %v59
    %v105 = vunpack.c.l.b16 %v60
    %v106 = vunpack.c.l.b16 %v61
    %v107 = vunpack.c.l.b16 %v62
    %v108 = vunpack.c.l.b16 %v63
    %v109 = vunpack.c.l.b16 %v64
    %v110 = vunpack.c.l.b16 %v65
    %v111 = vunpack.c.l.b16 %v66
    %v112 = vpack.c.b16 %v97, %v96
    %v113 = vpack.c.b16 %v99, %v98
    %v114 = vpack.c.b16 %v101, %v100
    %v115 = vpack.c.b16 %v103, %v102
    %v116 = vpack.c.b16 %v105, %v104
    %v117 = vpack.c.b16 %v107, %v106
    %v118 = vpack.c.b16 %v109, %v108
    %v119 = vpack.c.b16 %v111, %v110
    %128 = vmatprep.subr.bf16.mxu0 0
    %129 = vmatpush1.bf16.msra.mxu0 %v112
    %130 = vmatprep.subr.bf16.mxu0 0
    %131 = vmatpush1.bf16.msra.mxu0 %v113
    %132 = vmatprep.subr.bf16.mxu0 0
    %133 = vmatpush1.bf16.msra.mxu0 %v114
    %134 = vmatprep.subr.bf16.mxu0 0
    %135 = vmatpush1.bf16.msra.mxu0 %v115
    %136 = vmatprep.subr.bf16.mxu0 0
    %137 = vmatpush1.bf16.msra.mxu0 %v116
    %138 = vmatprep.subr.bf16.mxu0 0
    %139 = vmatpush1.bf16.msra.mxu0 %v117
    %140 = vmatprep.subr.bf16.mxu0 0
    %141 = vmatpush1.bf16.msra.mxu0 %v118
    %142 = vmatprep.subr.bf16.mxu0 0
    %143 = vmatpush1.bf16.msra.mxu0 %v119
    %144 = vmatprep.subr.bf16.mxu0 0
    %145 = vmatpush1.bf16.msra.mxu0 0
    %146 = vmatprep.subr.bf16.mxu0 0
    %147 = vmatpush1.bf16.msra.mxu0 0
    %148 = vmatprep.subr.bf16.mxu0 0
    %149 = vmatpush1.bf16.msra.mxu0 0
    %150 = vmatprep.subr.bf16.mxu0 0
    %151 = vmatpush1.bf16.msra.mxu0 0
    %152 = vmatprep.subr.bf16.mxu0 0
    %153 = vmatpush1.bf16.msra.mxu0 0
    %154 = vmatprep.subr.bf16.mxu0 0
    %155 = vmatpush1.bf16.msra.mxu0 0
    %156 = vmatprep.subr.bf16.mxu0 0
    %157 = vmatpush1.bf16.msra.mxu0 0
    %158 = vmatprep.subr.bf16.mxu0 0
    %159 = vmatpush1.bf16.msra.mxu0 0
    %160 = vmatprep.mubr.bf16.mxu0 0
    %161 = vmatmul.mubr.bf16.gmra.mrb[0].mxu0 %v78
    %v162 = vpop.f32.mrb[0].mxu0
    %v163 = vadd.f32 %v72, %v162
    %v164 = vpop.f32.mrb[0].mxu0
    %v165 = vpop.f32.mrb[0].mxu0
    %v166 = vadd.f32 %v72, %v165
    %v167 = vpop.f32.mrb[0].mxu0
    %168 = vdwg.mxu0
    %v169 = vmax.f32 %v163, 0.0
    %v170 = vmax.f32 %v166, 0.0
    %v171 = vpack.c.bf16 %v170, %v169
    %v172 = vld [vmem:[#allocation4] sm:$0xf]
    %v173 = vld [vmem:[#allocation4 + $0x4] sm:$0xf]
    %v174 = vld [vmem:[#allocation4 + $0x8] sm:$0xf]
    %v175 = vld [vmem:[#allocation4 + $0xc] sm:$0xf]
    %v176 = vld [vmem:[#allocation4 + $0x10] sm:$0xf]
    %v177 = vld [vmem:[#allocation4 + $0x14] sm:$0xf]
    %v178 = vld [vmem:[#allocation4 + $0x18] sm:$0xf]
    %v179 = vld [vmem:[#allocation4 + $0x1c] sm:$0xf]
    %v180 = vld [vmem:[#allocation4 + $0x20] sm:$0xf]
    %v181 = vld [vmem:[#allocation4 + $0x24] sm:$0xf]
    %v182 = vld [vmem:[#allocation4 + $0x28] sm:$0xf]
    %v183 = vld [vmem:[#allocation4 + $0x2c] sm:$0xf]
    %v184 = vld [vmem:[#allocation4 + $0x30] sm:$0xf]
    %v185 = vld [vmem:[#allocation4 + $0x34] sm:$0xf]
    %v186 = vld [vmem:[#allocation4 + $0x38] sm:$0xf]
    %v187 = vld [vmem:[#allocation4 + $0x3c] sm:$0xf]
    %v188 = vld [vmem:[%s4] sm:$0x1]
    %v190 = vlaneseq
    %v191 = vshrl.u32 %v190, 7
    %v192 = vsub.s32 0, %v191
    %v193 = vrot.slane %v188, %v192
    %v211 = vunpack.c.l.b16 %v172
    %v212 = vunpack.c.l.b16 %v173
    %v213 = vunpack.c.l.b16 %v174
    %v214 = vunpack.c.l.b16 %v175
    %v215 = vunpack.c.l.b16 %v176
    %v216 = vunpack.c.l.b16 %v177
    %v217 = vunpack.c.l.b16 %v178
    %v218 = vunpack.c.l.b16 %v179
    %v219 = vunpack.c.l.b16 %v180
    %v220 = vunpack.c.l.b16 %v181
    %v221 = vunpack.c.l.b16 %v182
    %v222 = vunpack.c.l.b16 %v183
    %v223 = vunpack.c.l.b16 %v184
    %v224 = vunpack.c.l.b16 %v185
    %v225 = vunpack.c.l.b16 %v186
    %v226 = vunpack.c.l.b16 %v187
    %v227 = vpack.c.b16 %v212, %v211
    %v228 = vpack.c.b16 %v214, %v213
    %v229 = vpack.c.b16 %v216, %v215
    %v230 = vpack.c.b16 %v218, %v217
    %v231 = vpack.c.b16 %v220, %v219
    %v232 = vpack.c.b16 %v222, %v221
    %v233 = vpack.c.b16 %v224, %v223
    %v234 = vpack.c.b16 %v226, %v225
    %243 = vmatprep.subr.bf16.mxu0 0
    %244 = vmatpush1.bf16.msra.mxu0 %v227
    %245 = vmatprep.subr.bf16.mxu0 0
    %246 = vmatpush1.bf16.msra.mxu0 %v228
    %247 = vmatprep.subr.bf16.mxu0 0
    %248 = vmatpush1.bf16.msra.mxu0 %v229
    %249 = vmatprep.subr.bf16.mxu0 0
    %250 = vmatpush1.bf16.msra.mxu0 %v230
    %251 = vmatprep.subr.bf16.mxu0 0
    %252 = vmatpush1.bf16.msra.mxu0 %v231
    %253 = vmatprep.subr.bf16.mxu0 0
    %254 = vmatpush1.bf16.msra.mxu0 %v232
    %255 = vmatprep.subr.bf16.mxu0 0
    %256 = vmatpush1.bf16.msra.mxu0 %v233
    %257 = vmatprep.subr.bf16.mxu0 0
    %258 = vmatpush1.bf16.msra.mxu0 %v234
    %259 = vmatprep.subr.bf16.mxu0 0
    %260 = vmatpush1.bf16.msra.mxu0 0
    %261 = vmatprep.subr.bf16.mxu0 0
    %262 = vmatpush1.bf16.msra.mxu0 0
    %263 = vmatprep.subr.bf16.mxu0 0
    %264 = vmatpush1.bf16.msra.mxu0 0
    %265 = vmatprep.subr.bf16.mxu0 0
    %266 = vmatpush1.bf16.msra.mxu0 0
    %267 = vmatprep.subr.bf16.mxu0 0
    %268 = vmatpush1.bf16.msra.mxu0 0
    %269 = vmatprep.subr.bf16.mxu0 0
    %270 = vmatpush1.bf16.msra.mxu0 0
    %271 = vmatprep.subr.bf16.mxu0 0
    %272 = vmatpush1.bf16.msra.mxu0 0
    %273 = vmatprep.subr.bf16.mxu0 0
    %274 = vmatpush1.bf16.msra.mxu0 0
    %275 = vmatprep.mubr.bf16.mxu0 0
    %276 = vmatmul.mubr.bf16.gmra.mrb[0].mxu0 %v171
    %v277 = vpop.f32.mrb[0].mxu0
    %v278 = vadd.f32 %v193, %v277
    %v279 = vpop.f32.mrb[0].mxu0
    %v280 = vpop.f32.mrb[0].mxu0
    %v281 = vadd.f32 %v193, %v280
    %v282 = vpop.f32.mrb[0].mxu0
    %283 = vdwg.mxu0
    %284 = vst [vmem:[%s5] sm:$0xff] %v278
    %285 = vst [vmem:[%s5 + $0x8] sm:$0xff] %v281
    // Predicated region
    $region30: #{toy_model_forward.1} parent=1 // pred_check
      _
    $region31: #{toy_model_forward.1} parent=1 // pred_check_branch
      %287 = sbr.rel (0) target = $region33
    $region32: #{toy_model_forward.1} parent=1 // pred_region
      _
    $region33: #{toy_model_forward.1} parent=1 // pred_fallthru
      _
    // Predicated region
    $region34: #{toy_model_forward.1} parent=1 // pred_check
      _
    $region35: #{toy_model_forward.1} parent=1 // pred_check_branch
      %289 = sbr.rel (0) target = $region37
    $region36: #{toy_model_forward.1} parent=1 // pred_region
      _
    $region37: #{toy_model_forward.1} parent=1 // pred_fallthru
      _
    %290 = vsyncpa [#allocation3], 1
    %291 = vsyncpa [#allocation5], 1

</llo_original>
